<compile_context>
chip_gen: v7x
topology: tpu7x:2x2x1
jax: 0.10.0
libtpu: 0.0.40
codegen_flags: <defaults>
</compile_context>

<pallas_src>
import jax
import jax.numpy as jnp
from jax.experimental import pallas as pl
from jax.experimental.pallas import tpu as pltpu

SUBLANE = 8


def _bayesian_lstm_kernel(x_ref, wih_t_ref, whh_t_ref, b_ref,
                          w1_t_ref, b1_ref, w2_t_ref, b2_ref, out_ref):
    Bp = out_ref.shape[0]                 # padded batch (multiple of 8)
    U = whh_t_ref.shape[0]                # hidden units
    T = x_ref.shape[0] // Bp              # time steps

    # Hoisted input projection for ALL time steps (off the serial chain):
    # (T*Bp, F)bf16 @ (F, 4U)bf16 -> (T*Bp, 4U)f32, plus combined bias.
    xproj = (jnp.dot(x_ref[...], wih_t_ref[...],
                     preferred_element_type=jnp.float32) + b_ref[...])

    whh = whh_t_ref[...]                  # (U, 4U) bf16, loop-invariant

    h = jnp.zeros((Bp, U), jnp.float32)
    c = jnp.zeros((Bp, U), jnp.float32)

    def sig(v):                           # sigmoid = 0.5*tanh(0.5*v) + 0.5
        return 0.5 * jnp.tanh(0.5 * v) + 0.5

    # Fully unrolled recurrence (T small & static).  One fused MXU call per
    # step; per-step xproj read is a tile-aligned (8, 4U) sublane slice.
    for t in range(T):
        r = t * Bp                        # multiple of 8 -> aligned slice
        pre = xproj[r:r + Bp, :] + jnp.dot(
            h.astype(jnp.bfloat16), whh, preferred_element_type=jnp.float32)
        i_g = sig(pre[:, 0 * U:1 * U])
        f_g = sig(pre[:, 1 * U:2 * U])
        g_g = jnp.tanh(pre[:, 2 * U:3 * U])
        o_g = sig(pre[:, 3 * U:4 * U])
        c = f_g * c + i_g * g_g
        h = o_g * jnp.tanh(c)

    # Head on the final hidden state: fc1 -> ReLU -> fc2.
    z = jnp.maximum(
        jnp.dot(h.astype(jnp.bfloat16), w1_t_ref[...],
                preferred_element_type=jnp.float32) + b1_ref[...], 0.0)
    y = (jnp.dot(z.astype(jnp.bfloat16), w2_t_ref[...],
                 preferred_element_type=jnp.float32) + b2_ref[...])
    out_ref[...] = y.astype(out_ref.dtype)


def prepare_params(params):
    """One-time fold of all weight transposes / bias combine / bf16 casts."""
    w_ih, w_hh = params["w_ih"], params["w_hh"]
    b_ih, b_hh = params["b_ih"], params["b_hh"]
    w1, b1, w2, b2 = params["w1"], params["b1"], params["w2"], params["b2"]
    U = w_hh.shape[1]
    O = w2.shape[0]
    return {
        "wih_t": w_ih.T.astype(jnp.bfloat16),                     # (F, 4U)
        "whh_t": w_hh.T.astype(jnp.bfloat16),                     # (U, 4U) [i,f,g,o]
        "b":     (b_ih + b_hh).reshape(1, 4 * U).astype(jnp.float32),
        "w1_t":  w1.T.astype(jnp.bfloat16),                       # (U, U)
        "b1":    b1.reshape(1, U).astype(jnp.float32),
        "w2_t":  w2.T.astype(jnp.bfloat16),                       # (U, O)
        "b2":    b2.reshape(1, O).astype(jnp.float32),
    }


@jax.jit
def bayesian_lstm_forward(x, prep):
    """x: (B, T, F) float32, batch_first like the PyTorch module."""
    B, T, F = x.shape
    Bp = max(SUBLANE, ((B + SUBLANE - 1) // SUBLANE) * SUBLANE)
    O = prep["w2_t"].shape[1]

    # Time-major, batch padded to a full sublane group, flattened so the
    # input projection is a single matmul in the kernel.
    xt = jnp.transpose(x, (1, 0, 2))                              # (T, B, F)
    xt = jnp.pad(xt, ((0, 0), (0, Bp - B), (0, 0)))               # (T, Bp, F)
    x2d = xt.reshape(T * Bp, F).astype(jnp.bfloat16)              # (T*Bp, F)

    vmem = pl.BlockSpec(memory_space=pltpu.MemorySpace.VMEM)
    out = pl.pallas_call(
        _bayesian_lstm_kernel,
        out_shape=jax.ShapeDtypeStruct((Bp, O), jnp.float32),
        in_specs=[vmem] * 8,
        out_specs=vmem,
    )(x2d, prep["wih_t"], prep["whh_t"], prep["b"],
      prep["w1_t"], prep["b1"], prep["w2_t"], prep["b2"])
    return out[:B]


def init_params(key, units, output_size, features):
    """Deterministic init mimicking torch uniform(-1/sqrt(U), 1/sqrt(U))."""
    ks = jax.random.split(key, 8)
    s = 1.0 / jnp.sqrt(jnp.float32(units))
    u = lambda k, shape: jax.random.uniform(k, shape, jnp.float32, -s, s)
    return {
        "w_ih": u(ks[0], (4 * units, features)),
        "w_hh": u(ks[1], (4 * units, units)),
        "b_ih": u(ks[2], (4 * units,)),
        "b_hh": u(ks[3], (4 * units,)),
        "w1":   u(ks[4], (units, units)),
        "b1":   u(ks[5], (units,)),
        "w2":   u(ks[6], (output_size, units)),
        "b2":   u(ks[7], (output_size,)),
    }


def reference_forward(x, p):
    """Pure-JAX f32 reference (same math as torch.nn.LSTM + Linear head)."""
    B, T, F = x.shape
    U = p["w_hh"].shape[1]

    def step(carry, x_t):
        h, c = carry
        gates = x_t @ p["w_ih"].T + h @ p["w_hh"].T + p["b_ih"] + p["b_hh"]
        i = jax.nn.sigmoid(gates[:, 0 * U:1 * U])
        f = jax.nn.sigmoid(gates[:, 1 * U:2 * U])
        g = jnp.tanh(gates[:, 2 * U:3 * U])
        o = jax.nn.sigmoid(gates[:, 3 * U:4 * U])
        c = f * c + i * g
        h = o * jnp.tanh(c)
        return (h, c), None

    h0 = jnp.zeros((B, U), jnp.float32)
    (h, _), _ = jax.lax.scan(step, (h0, h0), jnp.transpose(x, (1, 0, 2)))
    z = jnp.maximum(h @ p["w1"].T + p["b1"], 0.0)
    return z @ p["w2"].T + p["b2"]


if __name__ == "__main__":
    # Module config: units (hidden), output_size, features.
    units, output_size, features = 32, 1, 4
    batch, seq = 2, 8

    key = jax.random.PRNGKey(0)
    k_x, k_p = jax.random.split(key)
    x = jax.random.normal(k_x, (batch, seq, features), jnp.float32)
    params = init_params(k_p, units, output_size, features)
    prep = prepare_params(params)

    out = bayesian_lstm_forward(x, prep)
    out = jax.block_until_ready(out)

    ref = reference_forward(x, params)
    assert out.shape == (batch, output_size)
    # bf16 MXU operands over the T-step recurrence -> loosened tolerance.
    assert jnp.allclose(out, ref, atol=5e-2, rtol=5e-2), (out, ref)

    # TODO(synk): dropout (training=True / predict_with_dropout MC sampling)
    # is a stochastic training-time path and is not part of the deterministic
    # inference forward implemented here; MC samples would be batched into the
    # padded B dimension (and across TCs on v7x) to reuse this kernel.
    print("KERNEL_OK")
</pallas_src>

<mosaic_0001>
module attributes {stable_mosaic.version = 11 : i64} {
  func.func @_bayesian_lstm_kernel(%arg0: memref<64x4xbf16, #tpu.memory_space<vmem>>, %arg1: memref<4x128xbf16, #tpu.memory_space<vmem>>, %arg2: memref<32x128xbf16, #tpu.memory_space<vmem>>, %arg3: memref<1x128xf32, #tpu.memory_space<vmem>>, %arg4: memref<32x32xbf16, #tpu.memory_space<vmem>>, %arg5: memref<1x32xf32, #tpu.memory_space<vmem>>, %arg6: memref<32x1xbf16, #tpu.memory_space<vmem>>, %arg7: memref<1x1xf32, #tpu.memory_space<vmem>>, %arg8: memref<8x1xf32, #tpu.memory_space<vmem>>) attributes {dimension_semantics = [], scalar_prefetch = 0 : i64, scratch_operands = 0 : i64, tpu.core_type = #tpu.core_type<tc>} {
    %c0 = arith.constant 0 : index
    %c0_0 = arith.constant 0 : index
    %0 = vector.load %arg0[%c0, %c0_0] : memref<64x4xbf16, #tpu.memory_space<vmem>>, vector<64x4xbf16>
    %c0_1 = arith.constant 0 : index
    %c0_2 = arith.constant 0 : index
    %1 = vector.load %arg1[%c0_1, %c0_2] : memref<4x128xbf16, #tpu.memory_space<vmem>>, vector<4x128xbf16>
    %cst = arith.constant dense<0.000000e+00> : vector<64x128xf32>
    %2 = tpu.matmul %0, %1, %cst {dimension_numbers = #tpu.dot_dimension_numbers<[1], [0], [0], [1], [0, 0, 1, 1], [], []>} : vector<64x4xbf16>, vector<4x128xbf16>, vector<64x128xf32> -> vector<64x128xf32>
    %c0_3 = arith.constant 0 : index
    %c0_4 = arith.constant 0 : index
    %3 = vector.load %arg3[%c0_3, %c0_4] : memref<1x128xf32, #tpu.memory_space<vmem>>, vector<1x128xf32>
    %4 = vector.broadcast %3 : vector<1x128xf32> to vector<64x128xf32>
    %5 = arith.addf %2, %4 : vector<64x128xf32>
    %c0_5 = arith.constant 0 : index
    %c0_6 = arith.constant 0 : index
    %6 = vector.load %arg2[%c0_5, %c0_6] : memref<32x128xbf16, #tpu.memory_space<vmem>>, vector<32x128xbf16>
    %cst_7 = arith.constant 0.000000e+00 : f32
    %7 = vector.broadcast %cst_7 : f32 to vector<8x32xf32>
    %cst_8 = arith.constant 0.000000e+00 : f32
    %8 = vector.broadcast %cst_8 : f32 to vector<8x32xf32>
    %9 = vector.extract_strided_slice %5 {offsets = [0, 0], sizes = [8, 128], strides = [1, 1]} : vector<64x128xf32> to vector<8x128xf32>
    %10 = arith.truncf %7 : vector<8x32xf32> to vector<8x32xbf16>
    %cst_9 = arith.constant dense<0.000000e+00> : vector<8x128xf32>
    %11 = tpu.matmul %10, %6, %cst_9 {dimension_numbers = #tpu.dot_dimension_numbers<[1], [0], [0], [1], [0, 0, 1, 1], [], []>} : vector<8x32xbf16>, vector<32x128xbf16>, vector<8x128xf32> -> vector<8x128xf32>
    %12 = arith.addf %9, %11 : vector<8x128xf32>
    %13 = vector.extract_strided_slice %12 {offsets = [0, 0], sizes = [8, 32], strides = [1, 1]} : vector<8x128xf32> to vector<8x32xf32>
    %cst_10 = arith.constant 5.000000e-01 : f32
    %14 = vector.broadcast %cst_10 : f32 to vector<8x32xf32>
    %15 = arith.mulf %14, %13 : vector<8x32xf32>
    %16 = math.tanh %15 : vector<8x32xf32>
    %cst_11 = arith.constant 5.000000e-01 : f32
    %17 = vector.broadcast %cst_11 : f32 to vector<8x32xf32>
    %18 = arith.mulf %17, %16 : vector<8x32xf32>
    %cst_12 = arith.constant 5.000000e-01 : f32
    %19 = vector.broadcast %cst_12 : f32 to vector<8x32xf32>
    %20 = arith.addf %18, %19 : vector<8x32xf32>
    %21 = vector.extract_strided_slice %12 {offsets = [0, 32], sizes = [8, 32], strides = [1, 1]} : vector<8x128xf32> to vector<8x32xf32>
    %cst_13 = arith.constant 5.000000e-01 : f32
    %22 = vector.broadcast %cst_13 : f32 to vector<8x32xf32>
    %23 = arith.mulf %22, %21 : vector<8x32xf32>
    %24 = math.tanh %23 : vector<8x32xf32>
    %cst_14 = arith.constant 5.000000e-01 : f32
    %25 = vector.broadcast %cst_14 : f32 to vector<8x32xf32>
    %26 = arith.mulf %25, %24 : vector<8x32xf32>
    %cst_15 = arith.constant 5.000000e-01 : f32
    %27 = vector.broadcast %cst_15 : f32 to vector<8x32xf32>
    %28 = arith.addf %26, %27 : vector<8x32xf32>
    %29 = vector.extract_strided_slice %12 {offsets = [0, 64], sizes = [8, 32], strides = [1, 1]} : vector<8x128xf32> to vector<8x32xf32>
    %30 = math.tanh %29 : vector<8x32xf32>
    %31 = vector.extract_strided_slice %12 {offsets = [0, 96], sizes = [8, 32], strides = [1, 1]} : vector<8x128xf32> to vector<8x32xf32>
    %cst_16 = arith.constant 5.000000e-01 : f32
    %32 = vector.broadcast %cst_16 : f32 to vector<8x32xf32>
    %33 = arith.mulf %32, %31 : vector<8x32xf32>
    %34 = math.tanh %33 : vector<8x32xf32>
    %cst_17 = arith.constant 5.000000e-01 : f32
    %35 = vector.broadcast %cst_17 : f32 to vector<8x32xf32>
    %36 = arith.mulf %35, %34 : vector<8x32xf32>
    %cst_18 = arith.constant 5.000000e-01 : f32
    %37 = vector.broadcast %cst_18 : f32 to vector<8x32xf32>
    %38 = arith.addf %36, %37 : vector<8x32xf32>
    %39 = arith.mulf %28, %8 : vector<8x32xf32>
    %40 = arith.mulf %20, %30 : vector<8x32xf32>
    %41 = arith.addf %39, %40 : vector<8x32xf32>
    %42 = math.tanh %41 : vector<8x32xf32>
    %43 = arith.mulf %38, %42 : vector<8x32xf32>
    %44 = vector.extract_strided_slice %5 {offsets = [8, 0], sizes = [8, 128], strides = [1, 1]} : vector<64x128xf32> to vector<8x128xf32>
    %45 = arith.truncf %43 : vector<8x32xf32> to vector<8x32xbf16>
    %cst_19 = arith.constant dense<0.000000e+00> : vector<8x128xf32>
    %46 = tpu.matmul %45, %6, %cst_19 {dimension_numbers = #tpu.dot_dimension_numbers<[1], [0], [0], [1], [0, 0, 1, 1], [], []>} : vector<8x32xbf16>, vector<32x128xbf16>, vector<8x128xf32> -> vector<8x128xf32>
    %47 = arith.addf %44, %46 : vector<8x128xf32>
    %48 = vector.extract_strided_slice %47 {offsets = [0, 0], sizes = [8, 32], strides = [1, 1]} : vector<8x128xf32> to vector<8x32xf32>
    %cst_20 = arith.constant 5.000000e-01 : f32
    %49 = vector.broadcast %cst_20 : f32 to vector<8x32xf32>
    %50 = arith.mulf %49, %48 : vector<8x32xf32>
    %51 = math.tanh %50 : vector<8x32xf32>
    %cst_21 = arith.constant 5.000000e-01 : f32
    %52 = vector.broadcast %cst_21 : f32 to vector<8x32xf32>
    %53 = arith.mulf %52, %51 : vector<8x32xf32>
    %cst_22 = arith.constant 5.000000e-01 : f32
    %54 = vector.broadcast %cst_22 : f32 to vector<8x32xf32>
    %55 = arith.addf %53, %54 : vector<8x32xf32>
    %56 = vector.extract_strided_slice %47 {offsets = [0, 32], sizes = [8, 32], strides = [1, 1]} : vector<8x128xf32> to vector<8x32xf32>
    %cst_23 = arith.constant 5.000000e-01 : f32
    %57 = vector.broadcast %cst_23 : f32 to vector<8x32xf32>
    %58 = arith.mulf %57, %56 : vector<8x32xf32>
    %59 = math.tanh %58 : vector<8x32xf32>
    %cst_24 = arith.constant 5.000000e-01 : f32
    %60 = vector.broadcast %cst_24 : f32 to vector<8x32xf32>
    %61 = arith.mulf %60, %59 : vector<8x32xf32>
    %cst_25 = arith.constant 5.000000e-01 : f32
    %62 = vector.broadcast %cst_25 : f32 to vector<8x32xf32>
    %63 = arith.addf %61, %62 : vector<8x32xf32>
    %64 = vector.extract_strided_slice %47 {offsets = [0, 64], sizes = [8, 32], strides = [1, 1]} : vector<8x128xf32> to vector<8x32xf32>
    %65 = math.tanh %64 : vector<8x32xf32>
    %66 = vector.extract_strided_slice %47 {offsets = [0, 96], sizes = [8, 32], strides = [1, 1]} : vector<8x128xf32> to vector<8x32xf32>
    %cst_26 = arith.constant 5.000000e-01 : f32
    %67 = vector.broadcast %cst_26 : f32 to vector<8x32xf32>
    %68 = arith.mulf %67, %66 : vector<8x32xf32>
    %69 = math.tanh %68 : vector<8x32xf32>
    %cst_27 = arith.constant 5.000000e-01 : f32
    %70 = vector.broadcast %cst_27 : f32 to vector<8x32xf32>
    %71 = arith.mulf %70, %69 : vector<8x32xf32>
    %cst_28 = arith.constant 5.000000e-01 : f32
    %72 = vector.broadcast %cst_28 : f32 to vector<8x32xf32>
    %73 = arith.addf %71, %72 : vector<8x32xf32>
    %74 = arith.mulf %63, %41 : vector<8x32xf32>
    %75 = arith.mulf %55, %65 : vector<8x32xf32>
    %76 = arith.addf %74, %75 : vector<8x32xf32>
    %77 = math.tanh %76 : vector<8x32xf32>
    %78 = arith.mulf %73, %77 : vector<8x32xf32>
    %79 = vector.extract_strided_slice %5 {offsets = [16, 0], sizes = [8, 128], strides = [1, 1]} : vector<64x128xf32> to vector<8x128xf32>
    %80 = arith.truncf %78 : vector<8x32xf32> to vector<8x32xbf16>
    %cst_29 = arith.constant dense<0.000000e+00> : vector<8x128xf32>
    %81 = tpu.matmul %80, %6, %cst_29 {dimension_numbers = #tpu.dot_dimension_numbers<[1], [0], [0], [1], [0, 0, 1, 1], [], []>} : vector<8x32xbf16>, vector<32x128xbf16>, vector<8x128xf32> -> vector<8x128xf32>
    %82 = arith.addf %79, %81 : vector<8x128xf32>
    %83 = vector.extract_strided_slice %82 {offsets = [0, 0], sizes = [8, 32], strides = [1, 1]} : vector<8x128xf32> to vector<8x32xf32>
    %cst_30 = arith.constant 5.000000e-01 : f32
    %84 = vector.broadcast %cst_30 : f32 to vector<8x32xf32>
    %85 = arith.mulf %84, %83 : vector<8x32xf32>
    %86 = math.tanh %85 : vector<8x32xf32>
    %cst_31 = arith.constant 5.000000e-01 : f32
    %87 = vector.broadcast %cst_31 : f32 to vector<8x32xf32>
    %88 = arith.mulf %87, %86 : vector<8x32xf32>
    %cst_32 = arith.constant 5.000000e-01 : f32
    %89 = vector.broadcast %cst_32 : f32 to vector<8x32xf32>
    %90 = arith.addf %88, %89 : vector<8x32xf32>
    %91 = vector.extract_strided_slice %82 {offsets = [0, 32], sizes = [8, 32], strides = [1, 1]} : vector<8x128xf32> to vector<8x32xf32>
    %cst_33 = arith.constant 5.000000e-01 : f32
    %92 = vector.broadcast %cst_33 : f32 to vector<8x32xf32>
    %93 = arith.mulf %92, %91 : vector<8x32xf32>
    %94 = math.tanh %93 : vector<8x32xf32>
    %cst_34 = arith.constant 5.000000e-01 : f32
    %95 = vector.broadcast %cst_34 : f32 to vector<8x32xf32>
    %96 = arith.mulf %95, %94 : vector<8x32xf32>
    %cst_35 = arith.constant 5.000000e-01 : f32
    %97 = vector.broadcast %cst_35 : f32 to vector<8x32xf32>
    %98 = arith.addf %96, %97 : vector<8x32xf32>
    %99 = vector.extract_strided_slice %82 {offsets = [0, 64], sizes = [8, 32], strides = [1, 1]} : vector<8x128xf32> to vector<8x32xf32>
    %100 = math.tanh %99 : vector<8x32xf32>
    %101 = vector.extract_strided_slice %82 {offsets = [0, 96], sizes = [8, 32], strides = [1, 1]} : vector<8x128xf32> to vector<8x32xf32>
    %cst_36 = arith.constant 5.000000e-01 : f32
    %102 = vector.broadcast %cst_36 : f32 to vector<8x32xf32>
    %103 = arith.mulf %102, %101 : vector<8x32xf32>
    %104 = math.tanh %103 : vector<8x32xf32>
    %cst_37 = arith.constant 5.000000e-01 : f32
    %105 = vector.broadcast %cst_37 : f32 to vector<8x32xf32>
    %106 = arith.mulf %105, %104 : vector<8x32xf32>
    %cst_38 = arith.constant 5.000000e-01 : f32
    %107 = vector.broadcast %cst_38 : f32 to vector<8x32xf32>
    %108 = arith.addf %106, %107 : vector<8x32xf32>
    %109 = arith.mulf %98, %76 : vector<8x32xf32>
    %110 = arith.mulf %90, %100 : vector<8x32xf32>
    %111 = arith.addf %109, %110 : vector<8x32xf32>
    %112 = math.tanh %111 : vector<8x32xf32>
    %113 = arith.mulf %108, %112 : vector<8x32xf32>
    %114 = vector.extract_strided_slice %5 {offsets = [24, 0], sizes = [8, 128], strides = [1, 1]} : vector<64x128xf32> to vector<8x128xf32>
    %115 = arith.truncf %113 : vector<8x32xf32> to vector<8x32xbf16>
    %cst_39 = arith.constant dense<0.000000e+00> : vector<8x128xf32>
    %116 = tpu.matmul %115, %6, %cst_39 {dimension_numbers = #tpu.dot_dimension_numbers<[1], [0], [0], [1], [0, 0, 1, 1], [], []>} : vector<8x32xbf16>, vector<32x128xbf16>, vector<8x128xf32> -> vector<8x128xf32>
    %117 = arith.addf %114, %116 : vector<8x128xf32>
    %118 = vector.extract_strided_slice %117 {offsets = [0, 0], sizes = [8, 32], strides = [1, 1]} : vector<8x128xf32> to vector<8x32xf32>
    %cst_40 = arith.constant 5.000000e-01 : f32
    %119 = vector.broadcast %cst_40 : f32 to vector<8x32xf32>
    %120 = arith.mulf %119, %118 : vector<8x32xf32>
    %121 = math.tanh %120 : vector<8x32xf32>
    %cst_41 = arith.constant 5.000000e-01 : f32
    %122 = vector.broadcast %cst_41 : f32 to vector<8x32xf32>
    %123 = arith.mulf %122, %121 : vector<8x32xf32>
    %cst_42 = arith.constant 5.000000e-01 : f32
    %124 = vector.broadcast %cst_42 : f32 to vector<8x32xf32>
    %125 = arith.addf %123, %124 : vector<8x32xf32>
    %126 = vector.extract_strided_slice %117 {offsets = [0, 32], sizes = [8, 32], strides = [1, 1]} : vector<8x128xf32> to vector<8x32xf32>
    %cst_43 = arith.constant 5.000000e-01 : f32
    %127 = vector.broadcast %cst_43 : f32 to vector<8x32xf32>
    %128 = arith.mulf %127, %126 : vector<8x32xf32>
    %129 = math.tanh %128 : vector<8x32xf32>
    %cst_44 = arith.constant 5.000000e-01 : f32
    %130 = vector.broadcast %cst_44 : f32 to vector<8x32xf32>
    %131 = arith.mulf %130, %129 : vector<8x32xf32>
    %cst_45 = arith.constant 5.000000e-01 : f32
    %132 = vector.broadcast %cst_45 : f32 to vector<8x32xf32>
    %133 = arith.addf %131, %132 : vector<8x32xf32>
    %134 = vector.extract_strided_slice %117 {offsets = [0, 64], sizes = [8, 32], strides = [1, 1]} : vector<8x128xf32> to vector<8x32xf32>
    %135 = math.tanh %134 : vector<8x32xf32>
    %136 = vector.extract_strided_slice %117 {offsets = [0, 96], sizes = [8, 32], strides = [1, 1]} : vector<8x128xf32> to vector<8x32xf32>
    %cst_46 = arith.constant 5.000000e-01 : f32
    %137 = vector.broadcast %cst_46 : f32 to vector<8x32xf32>
    %138 = arith.mulf %137, %136 : vector<8x32xf32>
    %139 = math.tanh %138 : vector<8x32xf32>
    %cst_47 = arith.constant 5.000000e-01 : f32
    %140 = vector.broadcast %cst_47 : f32 to vector<8x32xf32>
    %141 = arith.mulf %140, %139 : vector<8x32xf32>
    %cst_48 = arith.constant 5.000000e-01 : f32
    %142 = vector.broadcast %cst_48 : f32 to vector<8x32xf32>
    %143 = arith.addf %141, %142 : vector<8x32xf32>
    %144 = arith.mulf %133, %111 : vector<8x32xf32>
    %145 = arith.mulf %125, %135 : vector<8x32xf32>
    %146 = arith.addf %144, %145 : vector<8x32xf32>
    %147 = math.tanh %146 : vector<8x32xf32>
    %148 = arith.mulf %143, %147 : vector<8x32xf32>
    %149 = vector.extract_strided_slice %5 {offsets = [32, 0], sizes = [8, 128], strides = [1, 1]} : vector<64x128xf32> to vector<8x128xf32>
    %150 = arith.truncf %148 : vector<8x32xf32> to vector<8x32xbf16>
    %cst_49 = arith.constant dense<0.000000e+00> : vector<8x128xf32>
    %151 = tpu.matmul %150, %6, %cst_49 {dimension_numbers = #tpu.dot_dimension_numbers<[1], [0], [0], [1], [0, 0, 1, 1], [], []>} : vector<8x32xbf16>, vector<32x128xbf16>, vector<8x128xf32> -> vector<8x128xf32>
    %152 = arith.addf %149, %151 : vector<8x128xf32>
    %153 = vector.extract_strided_slice %152 {offsets = [0, 0], sizes = [8, 32], strides = [1, 1]} : vector<8x128xf32> to vector<8x32xf32>
    %cst_50 = arith.constant 5.000000e-01 : f32
    %154 = vector.broadcast %cst_50 : f32 to vector<8x32xf32>
    %155 = arith.mulf %154, %153 : vector<8x32xf32>
    %156 = math.tanh %155 : vector<8x32xf32>
    %cst_51 = arith.constant 5.000000e-01 : f32
    %157 = vector.broadcast %cst_51 : f32 to vector<8x32xf32>
    %158 = arith.mulf %157, %156 : vector<8x32xf32>
    %cst_52 = arith.constant 5.000000e-01 : f32
    %159 = vector.broadcast %cst_52 : f32 to vector<8x32xf32>
    %160 = arith.addf %158, %159 : vector<8x32xf32>
    %161 = vector.extract_strided_slice %152 {offsets = [0, 32], sizes = [8, 32], strides = [1, 1]} : vector<8x128xf32> to vector<8x32xf32>
    %cst_53 = arith.constant 5.000000e-01 : f32
    %162 = vector.broadcast %cst_53 : f32 to vector<8x32xf32>
    %163 = arith.mulf %162, %161 : vector<8x32xf32>
    %164 = math.tanh %163 : vector<8x32xf32>
    %cst_54 = arith.constant 5.000000e-01 : f32
    %165 = vector.broadcast %cst_54 : f32 to vector<8x32xf32>
    %166 = arith.mulf %165, %164 : vector<8x32xf32>
    %cst_55 = arith.constant 5.000000e-01 : f32
    %167 = vector.broadcast %cst_55 : f32 to vector<8x32xf32>
    %168 = arith.addf %166, %167 : vector<8x32xf32>
    %169 = vector.extract_strided_slice %152 {offsets = [0, 64], sizes = [8, 32], strides = [1, 1]} : vector<8x128xf32> to vector<8x32xf32>
    %170 = math.tanh %169 : vector<8x32xf32>
    %171 = vector.extract_strided_slice %152 {offsets = [0, 96], sizes = [8, 32], strides = [1, 1]} : vector<8x128xf32> to vector<8x32xf32>
    %cst_56 = arith.constant 5.000000e-01 : f32
    %172 = vector.broadcast %cst_56 : f32 to vector<8x32xf32>
    %173 = arith.mulf %172, %171 : vector<8x32xf32>
    %174 = math.tanh %173 : vector<8x32xf32>
    %cst_57 = arith.constant 5.000000e-01 : f32
    %175 = vector.broadcast %cst_57 : f32 to vector<8x32xf32>
    %176 = arith.mulf %175, %174 : vector<8x32xf32>
    %cst_58 = arith.constant 5.000000e-01 : f32
    %177 = vector.broadcast %cst_58 : f32 to vector<8x32xf32>
    %178 = arith.addf %176, %177 : vector<8x32xf32>
    %179 = arith.mulf %168, %146 : vector<8x32xf32>
    %180 = arith.mulf %160, %170 : vector<8x32xf32>
    %181 = arith.addf %179, %180 : vector<8x32xf32>
    %182 = math.tanh %181 : vector<8x32xf32>
    %183 = arith.mulf %178, %182 : vector<8x32xf32>
    %184 = vector.extract_strided_slice %5 {offsets = [40, 0], sizes = [8, 128], strides = [1, 1]} : vector<64x128xf32> to vector<8x128xf32>
    %185 = arith.truncf %183 : vector<8x32xf32> to vector<8x32xbf16>
    %cst_59 = arith.constant dense<0.000000e+00> : vector<8x128xf32>
    %186 = tpu.matmul %185, %6, %cst_59 {dimension_numbers = #tpu.dot_dimension_numbers<[1], [0], [0], [1], [0, 0, 1, 1], [], []>} : vector<8x32xbf16>, vector<32x128xbf16>, vector<8x128xf32> -> vector<8x128xf32>
    %187 = arith.addf %184, %186 : vector<8x128xf32>
    %188 = vector.extract_strided_slice %187 {offsets = [0, 0], sizes = [8, 32], strides = [1, 1]} : vector<8x128xf32> to vector<8x32xf32>
    %cst_60 = arith.constant 5.000000e-01 : f32
    %189 = vector.broadcast %cst_60 : f32 to vector<8x32xf32>
    %190 = arith.mulf %189, %188 : vector<8x32xf32>
    %191 = math.tanh %190 : vector<8x32xf32>
    %cst_61 = arith.constant 5.000000e-01 : f32
    %192 = vector.broadcast %cst_61 : f32 to vector<8x32xf32>
    %193 = arith.mulf %192, %191 : vector<8x32xf32>
    %cst_62 = arith.constant 5.000000e-01 : f32
    %194 = vector.broadcast %cst_62 : f32 to vector<8x32xf32>
    %195 = arith.addf %193, %194 : vector<8x32xf32>
    %196 = vector.extract_strided_slice %187 {offsets = [0, 32], sizes = [8, 32], strides = [1, 1]} : vector<8x128xf32> to vector<8x32xf32>
    %cst_63 = arith.constant 5.000000e-01 : f32
    %197 = vector.broadcast %cst_63 : f32 to vector<8x32xf32>
    %198 = arith.mulf %197, %196 : vector<8x32xf32>
    %199 = math.tanh %198 : vector<8x32xf32>
    %cst_64 = arith.constant 5.000000e-01 : f32
    %200 = vector.broadcast %cst_64 : f32 to vector<8x32xf32>
    %201 = arith.mulf %200, %199 : vector<8x32xf32>
    %cst_65 = arith.constant 5.000000e-01 : f32
    %202 = vector.broadcast %cst_65 : f32 to vector<8x32xf32>
    %203 = arith.addf %201, %202 : vector<8x32xf32>
    %204 = vector.extract_strided_slice %187 {offsets = [0, 64], sizes = [8, 32], strides = [1, 1]} : vector<8x128xf32> to vector<8x32xf32>
    %205 = math.tanh %204 : vector<8x32xf32>
    %206 = vector.extract_strided_slice %187 {offsets = [0, 96], sizes = [8, 32], strides = [1, 1]} : vector<8x128xf32> to vector<8x32xf32>
    %cst_66 = arith.constant 5.000000e-01 : f32
    %207 = vector.broadcast %cst_66 : f32 to vector<8x32xf32>
    %208 = arith.mulf %207, %206 : vector<8x32xf32>
    %209 = math.tanh %208 : vector<8x32xf32>
    %cst_67 = arith.constant 5.000000e-01 : f32
    %210 = vector.broadcast %cst_67 : f32 to vector<8x32xf32>
    %211 = arith.mulf %210, %209 : vector<8x32xf32>
    %cst_68 = arith.constant 5.000000e-01 : f32
    %212 = vector.broadcast %cst_68 : f32 to vector<8x32xf32>
    %213 = arith.addf %211, %212 : vector<8x32xf32>
    %214 = arith.mulf %203, %181 : vector<8x32xf32>
    %215 = arith.mulf %195, %205 : vector<8x32xf32>
    %216 = arith.addf %214, %215 : vector<8x32xf32>
    %217 = math.tanh %216 : vector<8x32xf32>
    %218 = arith.mulf %213, %217 : vector<8x32xf32>
    %219 = vector.extract_strided_slice %5 {offsets = [48, 0], sizes = [8, 128], strides = [1, 1]} : vector<64x128xf32> to vector<8x128xf32>
    %220 = arith.truncf %218 : vector<8x32xf32> to vector<8x32xbf16>
    %cst_69 = arith.constant dense<0.000000e+00> : vector<8x128xf32>
    %221 = tpu.matmul %220, %6, %cst_69 {dimension_numbers = #tpu.dot_dimension_numbers<[1], [0], [0], [1], [0, 0, 1, 1], [], []>} : vector<8x32xbf16>, vector<32x128xbf16>, vector<8x128xf32> -> vector<8x128xf32>
    %222 = arith.addf %219, %221 : vector<8x128xf32>
    %223 = vector.extract_strided_slice %222 {offsets = [0, 0], sizes = [8, 32], strides = [1, 1]} : vector<8x128xf32> to vector<8x32xf32>
    %cst_70 = arith.constant 5.000000e-01 : f32
    %224 = vector.broadcast %cst_70 : f32 to vector<8x32xf32>
    %225 = arith.mulf %224, %223 : vector<8x32xf32>
    %226 = math.tanh %225 : vector<8x32xf32>
    %cst_71 = arith.constant 5.000000e-01 : f32
    %227 = vector.broadcast %cst_71 : f32 to vector<8x32xf32>
    %228 = arith.mulf %227, %226 : vector<8x32xf32>
    %cst_72 = arith.constant 5.000000e-01 : f32
    %229 = vector.broadcast %cst_72 : f32 to vector<8x32xf32>
    %230 = arith.addf %228, %229 : vector<8x32xf32>
    %231 = vector.extract_strided_slice %222 {offsets = [0, 32], sizes = [8, 32], strides = [1, 1]} : vector<8x128xf32> to vector<8x32xf32>
    %cst_73 = arith.constant 5.000000e-01 : f32
    %232 = vector.broadcast %cst_73 : f32 to vector<8x32xf32>
    %233 = arith.mulf %232, %231 : vector<8x32xf32>
    %234 = math.tanh %233 : vector<8x32xf32>
    %cst_74 = arith.constant 5.000000e-01 : f32
    %235 = vector.broadcast %cst_74 : f32 to vector<8x32xf32>
    %236 = arith.mulf %235, %234 : vector<8x32xf32>
    %cst_75 = arith.constant 5.000000e-01 : f32
    %237 = vector.broadcast %cst_75 : f32 to vector<8x32xf32>
    %238 = arith.addf %236, %237 : vector<8x32xf32>
    %239 = vector.extract_strided_slice %222 {offsets = [0, 64], sizes = [8, 32], strides = [1, 1]} : vector<8x128xf32> to vector<8x32xf32>
    %240 = math.tanh %239 : vector<8x32xf32>
    %241 = vector.extract_strided_slice %222 {offsets = [0, 96], sizes = [8, 32], strides = [1, 1]} : vector<8x128xf32> to vector<8x32xf32>
    %cst_76 = arith.constant 5.000000e-01 : f32
    %242 = vector.broadcast %cst_76 : f32 to vector<8x32xf32>
    %243 = arith.mulf %242, %241 : vector<8x32xf32>
    %244 = math.tanh %243 : vector<8x32xf32>
    %cst_77 = arith.constant 5.000000e-01 : f32
    %245 = vector.broadcast %cst_77 : f32 to vector<8x32xf32>
    %246 = arith.mulf %245, %244 : vector<8x32xf32>
    %cst_78 = arith.constant 5.000000e-01 : f32
    %247 = vector.broadcast %cst_78 : f32 to vector<8x32xf32>
    %248 = arith.addf %246, %247 : vector<8x32xf32>
    %249 = arith.mulf %238, %216 : vector<8x32xf32>
    %250 = arith.mulf %230, %240 : vector<8x32xf32>
    %251 = arith.addf %249, %250 : vector<8x32xf32>
    %252 = math.tanh %251 : vector<8x32xf32>
    %253 = arith.mulf %248, %252 : vector<8x32xf32>
    %254 = vector.extract_strided_slice %5 {offsets = [56, 0], sizes = [8, 128], strides = [1, 1]} : vector<64x128xf32> to vector<8x128xf32>
    %255 = arith.truncf %253 : vector<8x32xf32> to vector<8x32xbf16>
    %cst_79 = arith.constant dense<0.000000e+00> : vector<8x128xf32>
    %256 = tpu.matmul %255, %6, %cst_79 {dimension_numbers = #tpu.dot_dimension_numbers<[1], [0], [0], [1], [0, 0, 1, 1], [], []>} : vector<8x32xbf16>, vector<32x128xbf16>, vector<8x128xf32> -> vector<8x128xf32>
    %257 = arith.addf %254, %256 : vector<8x128xf32>
    %258 = vector.extract_strided_slice %257 {offsets = [0, 0], sizes = [8, 32], strides = [1, 1]} : vector<8x128xf32> to vector<8x32xf32>
    %cst_80 = arith.constant 5.000000e-01 : f32
    %259 = vector.broadcast %cst_80 : f32 to vector<8x32xf32>
    %260 = arith.mulf %259, %258 : vector<8x32xf32>
    %261 = math.tanh %260 : vector<8x32xf32>
    %cst_81 = arith.constant 5.000000e-01 : f32
    %262 = vector.broadcast %cst_81 : f32 to vector<8x32xf32>
    %263 = arith.mulf %262, %261 : vector<8x32xf32>
    %cst_82 = arith.constant 5.000000e-01 : f32
    %264 = vector.broadcast %cst_82 : f32 to vector<8x32xf32>
    %265 = arith.addf %263, %264 : vector<8x32xf32>
    %266 = vector.extract_strided_slice %257 {offsets = [0, 32], sizes = [8, 32], strides = [1, 1]} : vector<8x128xf32> to vector<8x32xf32>
    %cst_83 = arith.constant 5.000000e-01 : f32
    %267 = vector.broadcast %cst_83 : f32 to vector<8x32xf32>
    %268 = arith.mulf %267, %266 : vector<8x32xf32>
    %269 = math.tanh %268 : vector<8x32xf32>
    %cst_84 = arith.constant 5.000000e-01 : f32
    %270 = vector.broadcast %cst_84 : f32 to vector<8x32xf32>
    %271 = arith.mulf %270, %269 : vector<8x32xf32>
    %cst_85 = arith.constant 5.000000e-01 : f32
    %272 = vector.broadcast %cst_85 : f32 to vector<8x32xf32>
    %273 = arith.addf %271, %272 : vector<8x32xf32>
    %274 = vector.extract_strided_slice %257 {offsets = [0, 64], sizes = [8, 32], strides = [1, 1]} : vector<8x128xf32> to vector<8x32xf32>
    %275 = math.tanh %274 : vector<8x32xf32>
    %276 = vector.extract_strided_slice %257 {offsets = [0, 96], sizes = [8, 32], strides = [1, 1]} : vector<8x128xf32> to vector<8x32xf32>
    %cst_86 = arith.constant 5.000000e-01 : f32
    %277 = vector.broadcast %cst_86 : f32 to vector<8x32xf32>
    %278 = arith.mulf %277, %276 : vector<8x32xf32>
    %279 = math.tanh %278 : vector<8x32xf32>
    %cst_87 = arith.constant 5.000000e-01 : f32
    %280 = vector.broadcast %cst_87 : f32 to vector<8x32xf32>
    %281 = arith.mulf %280, %279 : vector<8x32xf32>
    %cst_88 = arith.constant 5.000000e-01 : f32
    %282 = vector.broadcast %cst_88 : f32 to vector<8x32xf32>
    %283 = arith.addf %281, %282 : vector<8x32xf32>
    %284 = arith.mulf %273, %251 : vector<8x32xf32>
    %285 = arith.mulf %265, %275 : vector<8x32xf32>
    %286 = arith.addf %284, %285 : vector<8x32xf32>
    %287 = math.tanh %286 : vector<8x32xf32>
    %288 = arith.mulf %283, %287 : vector<8x32xf32>
    %289 = arith.truncf %288 : vector<8x32xf32> to vector<8x32xbf16>
    %c0_89 = arith.constant 0 : index
    %c0_90 = arith.constant 0 : index
    %290 = vector.load %arg4[%c0_89, %c0_90] : memref<32x32xbf16, #tpu.memory_space<vmem>>, vector<32x32xbf16>
    %cst_91 = arith.constant dense<0.000000e+00> : vector<8x32xf32>
    %291 = tpu.matmul %289, %290, %cst_91 {dimension_numbers = #tpu.dot_dimension_numbers<[1], [0], [0], [1], [0, 0, 1, 1], [], []>} : vector<8x32xbf16>, vector<32x32xbf16>, vector<8x32xf32> -> vector<8x32xf32>
    %c0_92 = arith.constant 0 : index
    %c0_93 = arith.constant 0 : index
    %292 = vector.load %arg5[%c0_92, %c0_93] : memref<1x32xf32, #tpu.memory_space<vmem>>, vector<1x32xf32>
    %293 = vector.broadcast %292 : vector<1x32xf32> to vector<8x32xf32>
    %294 = arith.addf %291, %293 : vector<8x32xf32>
    %cst_94 = arith.constant 0.000000e+00 : f32
    %295 = vector.broadcast %cst_94 : f32 to vector<8x32xf32>
    %296 = arith.maximumf %294, %295 : vector<8x32xf32>
    %297 = arith.truncf %296 : vector<8x32xf32> to vector<8x32xbf16>
    %c0_95 = arith.constant 0 : index
    %c0_96 = arith.constant 0 : index
    %298 = vector.load %arg6[%c0_95, %c0_96] : memref<32x1xbf16, #tpu.memory_space<vmem>>, vector<32x1xbf16>
    %cst_97 = arith.constant dense<0.000000e+00> : vector<8x1xf32>
    %299 = tpu.matmul %297, %298, %cst_97 {dimension_numbers = #tpu.dot_dimension_numbers<[1], [0], [0], [1], [0, 0, 1, 1], [], []>} : vector<8x32xbf16>, vector<32x1xbf16>, vector<8x1xf32> -> vector<8x1xf32>
    %c0_98 = arith.constant 0 : index
    %c0_99 = arith.constant 0 : index
    %300 = vector.load %arg7[%c0_98, %c0_99] : memref<1x1xf32, #tpu.memory_space<vmem>>, vector<1x1xf32>
    %301 = vector.broadcast %300 : vector<1x1xf32> to vector<8x1xf32>
    %302 = arith.addf %299, %301 : vector<8x1xf32>
    %c0_100 = arith.constant 0 : index
    %c0_101 = arith.constant 0 : index
    %303 = vector.load %arg8[%c0_100, %c0_101] : memref<8x1xf32, #tpu.memory_space<vmem>>, vector<8x1xf32>
    tpu.vector_store %arg8[%c0_100, %c0_101], %302 {strides = array<i32>} : memref<8x1xf32, #tpu.memory_space<vmem>>, vector<8x1xf32>,
    return
  }
}

</mosaic_0001>

<llo_original>
// kernel: bayesian_lstm_forward.1
$region0: #{bayesian_lstm_forward.1}
  #allocation0 [shape = 'u32[]', space=smem, size = 0x4, offset = 0x4, fixed_abs, tag = 'smem constant byte address 0x4 - core index']
  #allocation1 [shape = 'u32[144,128]{1,0:T(1,128)}', space=vmem, size = 0x12000, scoped, tag = 'internal scratch']
  #allocation2 [shape = 'f32[1,1]{1,0:T(1,128)S(1)}', space=vmem, size = 0x200, scoped, tag = 'scoped memory for bayesian_lstm_forward.1']
  %s0 = inlined_call_operand.vmem [shape: bf16[64,4], index: 0, kind: input, shape index: {}]
  %s1 = inlined_call_operand.vmem [shape: bf16[4,128], index: 1, kind: input, shape index: {}]
  %s2 = inlined_call_operand.vmem [shape: bf16[32,128], index: 2, kind: input, shape index: {}]
  %s3 = inlined_call_operand.vmem [shape: f32[1,128], index: 3, kind: input, shape index: {}]
  %s4 = inlined_call_operand.vmem [shape: bf16[32,32], index: 4, kind: input, shape index: {}]
  %s5 = inlined_call_operand.vmem [shape: f32[1,32], index: 5, kind: input, shape index: {}]
  %s6 = inlined_call_operand.vmem [shape: bf16[32,1], index: 6, kind: input, shape index: {}]
  %s7 = inlined_call_operand.<no memory space> [shape: f32[1,1], index: 7, kind: input, shape index: {}]
  %s8 = inlined_call_operand.vmem [shape: f32[8,1], index: 8, kind: output, shape index: {}]
  %s9 = sld [smem:[#allocation0]]
  $region42: #{bayesian_lstm_forward.1} parent=0
    _
  %s11 = ssub.s32 1, %s9
  %s12 = scalar_select 0, %s11, %s9
  %v13 = vstv %s7
  %14 = vst [vmem:[#allocation2] sm:$0x1] %v13
  // Predicated region
  $region2: #{bayesian_lstm_forward.1} parent=0 // pred_check
    _
  $region3: #{bayesian_lstm_forward.1} parent=0 // pred_check_branch
    %16 = sbr.rel (0) target = $region5
  $region4: #{bayesian_lstm_forward.1} parent=0 // pred_region
    _
  $region5: #{bayesian_lstm_forward.1} parent=0 // pred_fallthru
    _
  // Predicated region
  $region6: #{bayesian_lstm_forward.1} parent=0 // pred_check
    _
  $region7: #{bayesian_lstm_forward.1} parent=0 // pred_check_branch
    %18 = sbr.rel (0) target = $region9
  $region8: #{bayesian_lstm_forward.1} parent=0 // pred_region
    _
  $region9: #{bayesian_lstm_forward.1} parent=0 // pred_fallthru
    _
  // Predicated region
  $region10: #{bayesian_lstm_forward.1} parent=0 // pred_check
    _
  $region11: #{bayesian_lstm_forward.1} parent=0 // pred_check_branch
    %20 = sbr.rel (0) target = $region13
  $region12: #{bayesian_lstm_forward.1} parent=0 // pred_region
    _
  $region13: #{bayesian_lstm_forward.1} parent=0 // pred_fallthru
    _
  // Predicated region
  $region14: #{bayesian_lstm_forward.1} parent=0 // pred_check
    _
  $region15: #{bayesian_lstm_forward.1} parent=0 // pred_check_branch
    %22 = sbr.rel (0) target = $region17
  $region16: #{bayesian_lstm_forward.1} parent=0 // pred_region
    _
  $region17: #{bayesian_lstm_forward.1} parent=0 // pred_fallthru
    _
  // Predicated region
  $region18: #{bayesian_lstm_forward.1} parent=0 // pred_check
    _
  $region19: #{bayesian_lstm_forward.1} parent=0 // pred_check_branch
    %24 = sbr.rel (0) target = $region21
  $region20: #{bayesian_lstm_forward.1} parent=0 // pred_region
    _
  $region21: #{bayesian_lstm_forward.1} parent=0 // pred_fallthru
    _
  // Predicated region
  $region22: #{bayesian_lstm_forward.1} parent=0 // pred_check
    _
  $region23: #{bayesian_lstm_forward.1} parent=0 // pred_check_branch
    %26 = sbr.rel (0) target = $region25
  $region24: #{bayesian_lstm_forward.1} parent=0 // pred_region
    _
  $region25: #{bayesian_lstm_forward.1} parent=0 // pred_fallthru
    _
  // Predicated region
  $region26: #{bayesian_lstm_forward.1} parent=0 // pred_check
    _
  $region27: #{bayesian_lstm_forward.1} parent=0 // pred_check_branch
    %28 = sbr.rel (0) target = $region29
  $region28: #{bayesian_lstm_forward.1} parent=0 // pred_region
    _
  $region29: #{bayesian_lstm_forward.1} parent=0 // pred_fallthru
    _
  // Predicated region
  $region30: #{bayesian_lstm_forward.1} parent=0 // pred_check
    _
  $region31: #{bayesian_lstm_forward.1} parent=0 // pred_check_branch
    %30 = sbr.rel (0) target = $region33
  $region32: #{bayesian_lstm_forward.1} parent=0 // pred_region
    _
  $region33: #{bayesian_lstm_forward.1} parent=0 // pred_fallthru
    _
  %v32 = vld [vmem:[%s0] sm:$0xf]
  %v33 = vld [vmem:[%s0 + $0x4] sm:$0xf]
  %v34 = vld [vmem:[%s0 + $0x8] sm:$0xf]
  %v35 = vld [vmem:[%s0 + $0xc] sm:$0xf]
  %v36 = vld [vmem:[%s0 + $0x10] sm:$0xf]
  %v37 = vld [vmem:[%s0 + $0x14] sm:$0xf]
  %v38 = vld [vmem:[%s0 + $0x18] sm:$0xf]
  %v39 = vld [vmem:[%s0 + $0x1c] sm:$0xf]
  %v40 = vld [vmem:[%s1] sm:$0x3]
  %v41 = vld [vmem:[%s3] sm:$0x1]
  %v43 = vlaneseq
  %v44 = vshrl.u32 %v43, 7
  %v45 = vsub.s32 0, %v44
  %v46 = vrot.slane %v41, %v45
  %v56 = vunpack.c.l.b16 %v32
  %v57 = vunpack.c.l.b16 %v33
  %v58 = vunpack.c.l.b16 %v34
  %v59 = vunpack.c.l.b16 %v35
  %v60 = vunpack.c.l.b16 %v36
  %v61 = vunpack.c.l.b16 %v37
  %v62 = vunpack.c.l.b16 %v38
  %v63 = vunpack.c.l.b16 %v39
  %v64 = vpack.c.b16 %v57, %v56
  %v65 = vpack.c.b16 %v59, %v58
  %v66 = vpack.c.b16 %v61, %v60
  %v67 = vpack.c.b16 %v63, %v62
  %vm68 = vcmask 31744
  %v70 = vsel %vm68, %v64, 0
  %v73 = vsel %vm68, %v65, 0
  %v76 = vsel %vm68, %v66, 0
  %v79 = vsel %vm68, %v67, 0
  %vm81 = vcmask 1041408
  %v83 = vsel %vm81, %v40, 0
  %85 = vmatprep.subr.bf16.mxu0 0
  %86 = vmatpush1.bf16.msra.mxu0 %v83
  %87 = vmatprep.subr.bf16.mxu0 0
  %88 = vmatpush1.bf16.msra.mxu0 0
  %89 = vmatprep.subr.bf16.mxu0 0
  %90 = vmatpush1.bf16.msra.mxu0 0
  %91 = vmatprep.subr.bf16.mxu0 0
  %92 = vmatpush1.bf16.msra.mxu0 0
  %93 = vmatprep.subr.bf16.mxu0 0
  %94 = vmatpush1.bf16.msra.mxu0 0
  %95 = vmatprep.subr.bf16.mxu0 0
  %96 = vmatpush1.bf16.msra.mxu0 0
  %97 = vmatprep.subr.bf16.mxu0 0
  %98 = vmatpush1.bf16.msra.mxu0 0
  %99 = vmatprep.subr.bf16.mxu0 0
  %100 = vmatpush1.bf16.msra.mxu0 0
  %101 = vmatprep.subr.bf16.mxu0 0
  %102 = vmatpush1.bf16.msra.mxu0 0
  %103 = vmatprep.subr.bf16.mxu0 0
  %104 = vmatpush1.bf16.msra.mxu0 0
  %105 = vmatprep.subr.bf16.mxu0 0
  %106 = vmatpush1.bf16.msra.mxu0 0
  %107 = vmatprep.subr.bf16.mxu0 0
  %108 = vmatpush1.bf16.msra.mxu0 0
  %109 = vmatprep.subr.bf16.mxu0 0
  %110 = vmatpush1.bf16.msra.mxu0 0
  %111 = vmatprep.subr.bf16.mxu0 0
  %112 = vmatpush1.bf16.msra.mxu0 0
  %113 = vmatprep.subr.bf16.mxu0 0
  %114 = vmatpush1.bf16.msra.mxu0 0
  %115 = vmatprep.subr.bf16.mxu0 0
  %116 = vmatpush1.bf16.msra.mxu0 0
  %117 = vmatprep.mubr.bf16.mxu0 0
  %118 = vmatmul.mubr.bf16.gmra.mrb[0].mxu0 %v70
  %v119 = vpop.f32.mrb[0].mxu0
  %v120 = vadd.f32 %v46, %v119
  %v121 = vpop.f32.mrb[0].mxu0
  %v122 = vpop.f32.mrb[0].mxu0
  %v123 = vadd.f32 %v46, %v122
  %v124 = vpop.f32.mrb[0].mxu0
  %125 = vmatprep.mubr.bf16.mxu0 0
  %126 = vmatmul.mubr.bf16.gmra.mrb[0].mxu0 %v73
  %v127 = vpop.f32.mrb[0].mxu0
  %v128 = vadd.f32 %v46, %v127
  %v129 = vpop.f32.mrb[0].mxu0
  %v130 = vpop.f32.mrb[0].mxu0
  %v131 = vadd.f32 %v46, %v130
  %v132 = vpop.f32.mrb[0].mxu0
  %133 = vmatprep.mubr.bf16.mxu0 0
  %134 = vmatmul.mubr.bf16.gmra.mrb[0].mxu0 %v76
  %v135 = vpop.f32.mrb[0].mxu0
  %v136 = vadd.f32 %v46, %v135
  %v137 = vpop.f32.mrb[0].mxu0
  %v138 = vpop.f32.mrb[0].mxu0
  %v139 = vadd.f32 %v46, %v138
  %v140 = vpop.f32.mrb[0].mxu0
  %141 = vmatprep.mubr.bf16.mxu0 0
  %142 = vmatmul.mubr.bf16.gmra.mrb[0].mxu0 %v79
  %v143 = vpop.f32.mrb[0].mxu0
  %v144 = vadd.f32 %v46, %v143
  %v145 = vpop.f32.mrb[0].mxu0
  %v146 = vpop.f32.mrb[0].mxu0
  %v147 = vadd.f32 %v46, %v146
  %v148 = vpop.f32.mrb[0].mxu0
  %149 = vdwg.mxu0
  %v150 = vld [vmem:[%s2] sm:$0xf]
  %v151 = vld [vmem:[%s2 + $0x4] sm:$0xf]
  %v152 = vld [vmem:[%s2 + $0x8] sm:$0xf]
  %v153 = vld [vmem:[%s2 + $0xc] sm:$0xf]
  %v158 = vunpack.c.l.b16 %v150
  %v159 = vunpack.c.l.b16 %v151
  %v160 = vunpack.c.l.b16 %v152
  %v161 = vunpack.c.l.b16 %v153
  %v162 = vpack.c.b16 %v159, %v158
  %v163 = vpack.c.b16 %v161, %v160
  %vm166 = vcmask 261120
  %v168 = vsel %vm166, 0, 0
  %170 = vmatprep.subr.bf16.mxu0 0
  %171 = vmatpush1.bf16.msra.mxu0 %v162
  %172 = vmatprep.subr.bf16.mxu0 0
  %173 = vmatpush1.bf16.msra.mxu0 %v163
  %174 = vmatprep.subr.bf16.mxu0 0
  %175 = vmatpush1.bf16.msra.mxu0 0
  %176 = vmatprep.subr.bf16.mxu0 0
  %177 = vmatpush1.bf16.msra.mxu0 0
  %178 = vmatprep.subr.bf16.mxu0 0
  %179 = vmatpush1.bf16.msra.mxu0 0
  %180 = vmatprep.subr.bf16.mxu0 0
  %181 = vmatpush1.bf16.msra.mxu0 0
  %182 = vmatprep.subr.bf16.mxu0 0
  %183 = vmatpush1.bf16.msra.mxu0 0
  %184 = vmatprep.subr.bf16.mxu0 0
  %185 = vmatpush1.bf16.msra.mxu0 0
  %186 = vmatprep.subr.bf16.mxu0 0
  %187 = vmatpush1.bf16.msra.mxu0 0
  %188 = vmatprep.subr.bf16.mxu0 0
  %189 = vmatpush1.bf16.msra.mxu0 0
  %190 = vmatprep.subr.bf16.mxu0 0
  %191 = vmatpush1.bf16.msra.mxu0 0
  %192 = vmatprep.subr.bf16.mxu0 0
  %193 = vmatpush1.bf16.msra.mxu0 0
  %194 = vmatprep.subr.bf16.mxu0 0
  %195 = vmatpush1.bf16.msra.mxu0 0
  %196 = vmatprep.subr.bf16.mxu0 0
  %197 = vmatpush1.bf16.msra.mxu0 0
  %198 = vmatprep.subr.bf16.mxu0 0
  %199 = vmatpush1.bf16.msra.mxu0 0
  %200 = vmatprep.subr.bf16.mxu0 0
  %201 = vmatpush1.bf16.msra.mxu0 0
  %202 = vmatprep.mubr.bf16.mxu0 0
  %203 = vmatmul.mubr.bf16.gmra.mrb[0].mxu0 %v168
  %v204 = vpop.f32.mrb[0].mxu0
  %v205 = vadd.f32 0.0, %v204
  %v206 = vpop.f32.mrb[0].mxu0
  %v207 = vpop.f32.mrb[0].mxu0
  %v208 = vpop.f32.mrb[0].mxu0
  %209 = vdwg.mxu0
  %v210 = vadd.f32 %v120, %v205
  %v211 = vmul.f32 %v210, 0.5
  %v212 = vtanh.pop %v211
  %v213 = vmul.f32 %v212, 0.5
  %v214 = vadd.f32 %v213, 0.5
  %v215 = vtanh.pop %v210
  %v216 = vmul.f32 %v214, 0.0
  %218 = vrot.lane.b32.xlu0 %v215, 64
  %v219 = vpop.permute.xlu0 %218
  %v221 = vmul.f32 %v214, %v219
  %223 = vrot.lane.b32.xlu0 %v221, 32
  %v224 = vpop.permute.xlu0 %223
  %v226 = vadd.f32 %v216, %v224
  %v227 = vtanh.pop %v226
  %229 = vrot.lane.b32.xlu0 %v227, 64
  %v230 = vpop.permute.xlu0 %229
  %v232 = vmul.f32 %v214, %v230
  %v233 = vpack.c.bf16 %v232, %v232
  %235 = vrot.lane.b32.xlu0 %v233, 32
  %v236 = vpop.permute.xlu0 %235
  %v238 = vsel %vm166, %v236, 0
  %240 = vmatprep.subr.bf16.mxu0 0
  %241 = vmatpush1.bf16.msra.mxu0 %v162
  %242 = vmatprep.subr.bf16.mxu0 0
  %243 = vmatpush1.bf16.msra.mxu0 %v163
  %244 = vmatprep.subr.bf16.mxu0 0
  %245 = vmatpush1.bf16.msra.mxu0 0
  %246 = vmatprep.subr.bf16.mxu0 0
  %247 = vmatpush1.bf16.msra.mxu0 0
  %248 = vmatprep.subr.bf16.mxu0 0
  %249 = vmatpush1.bf16.msra.mxu0 0
  %250 = vmatprep.subr.bf16.mxu0 0
  %251 = vmatpush1.bf16.msra.mxu0 0
  %252 = vmatprep.subr.bf16.mxu0 0
  %253 = vmatpush1.bf16.msra.mxu0 0
  %254 = vmatprep.subr.bf16.mxu0 0
  %255 = vmatpush1.bf16.msra.mxu0 0
  %256 = vmatprep.subr.bf16.mxu0 0
  %257 = vmatpush1.bf16.msra.mxu0 0
  %258 = vmatprep.subr.bf16.mxu0 0
  %259 = vmatpush1.bf16.msra.mxu0 0
  %260 = vmatprep.subr.bf16.mxu0 0
  %261 = vmatpush1.bf16.msra.mxu0 0
  %262 = vmatprep.subr.bf16.mxu0 0
  %263 = vmatpush1.bf16.msra.mxu0 0
  %264 = vmatprep.subr.bf16.mxu0 0
  %265 = vmatpush1.bf16.msra.mxu0 0
  %266 = vmatprep.subr.bf16.mxu0 0
  %267 = vmatpush1.bf16.msra.mxu0 0
  %268 = vmatprep.subr.bf16.mxu0 0
  %269 = vmatpush1.bf16.msra.mxu0 0
  %270 = vmatprep.subr.bf16.mxu0 0
  %271 = vmatpush1.bf16.msra.mxu0 0
  %272 = vmatprep.mubr.bf16.mxu0 0
  %273 = vmatmul.mubr.bf16.gmra.mrb[0].mxu0 %v238
  %v274 = vpop.f32.mrb[0].mxu0
  %v275 = vadd.f32 0.0, %v274
  %v276 = vpop.f32.mrb[0].mxu0
  %v277 = vpop.f32.mrb[0].mxu0
  %v278 = vpop.f32.mrb[0].mxu0
  %279 = vdwg.mxu0
  %v280 = vadd.f32 %v123, %v275
  %v281 = vmul.f32 %v280, 0.5
  %v282 = vtanh.pop %v281
  %v283 = vmul.f32 %v282, 0.5
  %v284 = vadd.f32 %v283, 0.5
  %v285 = vtanh.pop %v280
  %v286 = vmul.f32 %v284, %v226
  %288 = vrot.lane.b32.xlu0 %v285, 64
  %v289 = vpop.permute.xlu0 %288
  %v291 = vmul.f32 %v284, %v289
  %293 = vrot.lane.b32.xlu0 %v291, 32
  %v294 = vpop.permute.xlu0 %293
  %v296 = vadd.f32 %v286, %v294
  %v297 = vtanh.pop %v296
  %299 = vrot.lane.b32.xlu0 %v297, 64
  %v300 = vpop.permute.xlu0 %299
  %v302 = vmul.f32 %v284, %v300
  %v303 = vpack.c.bf16 %v302, %v302
  %305 = vrot.lane.b32.xlu0 %v303, 32
  %v306 = vpop.permute.xlu0 %305
  %v308 = vsel %vm166, %v306, 0
  %310 = vmatprep.subr.bf16.mxu0 0
  %311 = vmatpush1.bf16.msra.mxu0 %v162
  %312 = vmatprep.subr.bf16.mxu0 0
  %313 = vmatpush1.bf16.msra.mxu0 %v163
  %314 = vmatprep.subr.bf16.mxu0 0
  %315 = vmatpush1.bf16.msra.mxu0 0
  %316 = vmatprep.subr.bf16.mxu0 0
  %317 = vmatpush1.bf16.msra.mxu0 0
  %318 = vmatprep.subr.bf16.mxu0 0
  %319 = vmatpush1.bf16.msra.mxu0 0
  %320 = vmatprep.subr.bf16.mxu0 0
  %321 = vmatpush1.bf16.msra.mxu0 0
  %322 = vmatprep.subr.bf16.mxu0 0
  %323 = vmatpush1.bf16.msra.mxu0 0
  %324 = vmatprep.subr.bf16.mxu0 0
  %325 = vmatpush1.bf16.msra.mxu0 0
  %326 = vmatprep.subr.bf16.mxu0 0
  %327 = vmatpush1.bf16.msra.mxu0 0
  %328 = vmatprep.subr.bf16.mxu0 0
  %329 = vmatpush1.bf16.msra.mxu0 0
  %330 = vmatprep.subr.bf16.mxu0 0
  %331 = vmatpush1.bf16.msra.mxu0 0
  %332 = vmatprep.subr.bf16.mxu0 0
  %333 = vmatpush1.bf16.msra.mxu0 0
  %334 = vmatprep.subr.bf16.mxu0 0
  %335 = vmatpush1.bf16.msra.mxu0 0
  %336 = vmatprep.subr.bf16.mxu0 0
  %337 = vmatpush1.bf16.msra.mxu0 0
  %338 = vmatprep.subr.bf16.mxu0 0
  %339 = vmatpush1.bf16.msra.mxu0 0
  %340 = vmatprep.subr.bf16.mxu0 0
  %341 = vmatpush1.bf16.msra.mxu0 0
  %342 = vmatprep.mubr.bf16.mxu0 0
  %343 = vmatmul.mubr.bf16.gmra.mrb[0].mxu0 %v308
  %v344 = vpop.f32.mrb[0].mxu0
  %v345 = vadd.f32 0.0, %v344
  %v346 = vpop.f32.mrb[0].mxu0
  %v347 = vpop.f32.mrb[0].mxu0
  %v348 = vpop.f32.mrb[0].mxu0
  %349 = vdwg.mxu0
  %v350 = vadd.f32 %v128, %v345
  %v351 = vmul.f32 %v350, 0.5
  %v352 = vtanh.pop %v351
  %v353 = vmul.f32 %v352, 0.5
  %v354 = vadd.f32 %v353, 0.5
  %v355 = vtanh.pop %v350
  %v356 = vmul.f32 %v354, %v296
  %358 = vrot.lane.b32.xlu0 %v355, 64
  %v359 = vpop.permute.xlu0 %358
  %v361 = vmul.f32 %v354, %v359
  %363 = vrot.lane.b32.xlu0 %v361, 32
  %v364 = vpop.permute.xlu0 %363
  %v366 = vadd.f32 %v356, %v364
  %v367 = vtanh.pop %v366
  %369 = vrot.lane.b32.xlu0 %v367, 64
  %v370 = vpop.permute.xlu0 %369
  %v372 = vmul.f32 %v354, %v370
  %v373 = vpack.c.bf16 %v372, %v372
  %375 = vrot.lane.b32.xlu0 %v373, 32
  %v376 = vpop.permute.xlu0 %375
  %v378 = vsel %vm166, %v376, 0
  %380 = vmatprep.subr.bf16.mxu0 0
  %381 = vmatpush1.bf16.msra.mxu0 %v162
  %382 = vmatprep.subr.bf16.mxu0 0
  %383 = vmatpush1.bf16.msra.mxu0 %v163
  %384 = vmatprep.subr.bf16.mxu0 0
  %385 = vmatpush1.bf16.msra.mxu0 0
  %386 = vmatprep.subr.bf16.mxu0 0
  %387 = vmatpush1.bf16.msra.mxu0 0
  %388 = vmatprep.subr.bf16.mxu0 0
  %389 = vmatpush1.bf16.msra.mxu0 0
  %390 = vmatprep.subr.bf16.mxu0 0
  %391 = vmatpush1.bf16.msra.mxu0 0
  %392 = vmatprep.subr.bf16.mxu0 0
  %393 = vmatpush1.bf16.msra.mxu0 0
  %394 = vmatprep.subr.bf16.mxu0 0
  %395 = vmatpush1.bf16.msra.mxu0 0
  %396 = vmatprep.subr.bf16.mxu0 0
  %397 = vmatpush1.bf16.msra.mxu0 0
  %398 = vmatprep.subr.bf16.mxu0 0
  %399 = vmatpush1.bf16.msra.mxu0 0
  %400 = vmatprep.subr.bf16.mxu0 0
  %401 = vmatpush1.bf16.msra.mxu0 0
  %402 = vmatprep.subr.bf16.mxu0 0
  %403 = vmatpush1.bf16.msra.mxu0 0
  %404 = vmatprep.subr.bf16.mxu0 0
  %405 = vmatpush1.bf16.msra.mxu0 0
  %406 = vmatprep.subr.bf16.mxu0 0
  %407 = vmatpush1.bf16.msra.mxu0 0
  %408 = vmatprep.subr.bf16.mxu0 0
  %409 = vmatpush1.bf16.msra.mxu0 0
  %410 = vmatprep.subr.bf16.mxu0 0
  %411 = vmatpush1.bf16.msra.mxu0 0
  %412 = vmatprep.mubr.bf16.mxu0 0
  %413 = vmatmul.mubr.bf16.gmra.mrb[0].mxu0 %v378
  %v414 = vpop.f32.mrb[0].mxu0
  %v415 = vadd.f32 0.0, %v414
  %v416 = vpop.f32.mrb[0].mxu0
  %v417 = vpop.f32.mrb[0].mxu0
  %v418 = vpop.f32.mrb[0].mxu0
  %419 = vdwg.mxu0
  %v420 = vadd.f32 %v131, %v415
  %v421 = vmul.f32 %v420, 0.5
  %v422 = vtanh.pop %v421
  %v423 = vmul.f32 %v422, 0.5
  %v424 = vadd.f32 %v423, 0.5
  %v425 = vtanh.pop %v420
  %v426 = vmul.f32 %v424, %v366
  %428 = vrot.lane.b32.xlu0 %v425, 64
  %v429 = vpop.permute.xlu0 %428
  %v431 = vmul.f32 %v424, %v429
  %433 = vrot.lane.b32.xlu0 %v431, 32
  %v434 = vpop.permute.xlu0 %433
  %v436 = vadd.f32 %v426, %v434
  %v437 = vtanh.pop %v436
  %439 = vrot.lane.b32.xlu0 %v437, 64
  %v440 = vpop.permute.xlu0 %439
  %v442 = vmul.f32 %v424, %v440
  %v443 = vpack.c.bf16 %v442, %v442
  %445 = vrot.lane.b32.xlu0 %v443, 32
  %v446 = vpop.permute.xlu0 %445
  %v448 = vsel %vm166, %v446, 0
  %450 = vmatprep.subr.bf16.mxu0 0
  %451 = vmatpush1.bf16.msra.mxu0 %v162
  %452 = vmatprep.subr.bf16.mxu0 0
  %453 = vmatpush1.bf16.msra.mxu0 %v163
  %454 = vmatprep.subr.bf16.mxu0 0
  %455 = vmatpush1.bf16.msra.mxu0 0
  %456 = vmatprep.subr.bf16.mxu0 0
  %457 = vmatpush1.bf16.msra.mxu0 0
  %458 = vmatprep.subr.bf16.mxu0 0
  %459 = vmatpush1.bf16.msra.mxu0 0
  %460 = vmatprep.subr.bf16.mxu0 0
  %461 = vmatpush1.bf16.msra.mxu0 0
  %462 = vmatprep.subr.bf16.mxu0 0
  %463 = vmatpush1.bf16.msra.mxu0 0
  %464 = vmatprep.subr.bf16.mxu0 0
  %465 = vmatpush1.bf16.msra.mxu0 0
  %466 = vmatprep.subr.bf16.mxu0 0
  %467 = vmatpush1.bf16.msra.mxu0 0
  %468 = vmatprep.subr.bf16.mxu0 0
  %469 = vmatpush1.bf16.msra.mxu0 0
  %470 = vmatprep.subr.bf16.mxu0 0
  %471 = vmatpush1.bf16.msra.mxu0 0
  %472 = vmatprep.subr.bf16.mxu0 0
  %473 = vmatpush1.bf16.msra.mxu0 0
  %474 = vmatprep.subr.bf16.mxu0 0
  %475 = vmatpush1.bf16.msra.mxu0 0
  %476 = vmatprep.subr.bf16.mxu0 0
  %477 = vmatpush1.bf16.msra.mxu0 0
  %478 = vmatprep.subr.bf16.mxu0 0
  %479 = vmatpush1.bf16.msra.mxu0 0
  %480 = vmatprep.subr.bf16.mxu0 0
  %481 = vmatpush1.bf16.msra.mxu0 0
  %482 = vmatprep.mubr.bf16.mxu0 0
  %483 = vmatmul.mubr.bf16.gmra.mrb[0].mxu0 %v448
  %v484 = vpop.f32.mrb[0].mxu0
  %v485 = vadd.f32 0.0, %v484
  %v486 = vpop.f32.mrb[0].mxu0
  %v487 = vpop.f32.mrb[0].mxu0
  %v488 = vpop.f32.mrb[0].mxu0
  %489 = vdwg.mxu0
  %v490 = vadd.f32 %v136, %v485
  %v491 = vmul.f32 %v490, 0.5
  %v492 = vtanh.pop %v491
  %v493 = vmul.f32 %v492, 0.5
  %v494 = vadd.f32 %v493, 0.5
  %v495 = vtanh.pop %v490
  %v496 = vmul.f32 %v494, %v436
  %498 = vrot.lane.b32.xlu0 %v495, 64
  %v499 = vpop.permute.xlu0 %498
  %v501 = vmul.f32 %v494, %v499
  %503 = vrot.lane.b32.xlu0 %v501, 32
  %v504 = vpop.permute.xlu0 %503
  %v506 = vadd.f32 %v496, %v504
  %v507 = vtanh.pop %v506
  %509 = vrot.lane.b32.xlu0 %v507, 64
  %v510 = vpop.permute.xlu0 %509
  %v512 = vmul.f32 %v494, %v510
  %v513 = vpack.c.bf16 %v512, %v512
  %515 = vrot.lane.b32.xlu0 %v513, 32
  %v516 = vpop.permute.xlu0 %515
  %v518 = vsel %vm166, %v516, 0
  %520 = vmatprep.subr.bf16.mxu0 0
  %521 = vmatpush1.bf16.msra.mxu0 %v162
  %522 = vmatprep.subr.bf16.mxu0 0
  %523 = vmatpush1.bf16.msra.mxu0 %v163
  %524 = vmatprep.subr.bf16.mxu0 0
  %525 = vmatpush1.bf16.msra.mxu0 0
  %526 = vmatprep.subr.bf16.mxu0 0
  %527 = vmatpush1.bf16.msra.mxu0 0
  %528 = vmatprep.subr.bf16.mxu0 0
  %529 = vmatpush1.bf16.msra.mxu0 0
  %530 = vmatprep.subr.bf16.mxu0 0
  %531 = vmatpush1.bf16.msra.mxu0 0
  %532 = vmatprep.subr.bf16.mxu0 0
  %533 = vmatpush1.bf16.msra.mxu0 0
  %534 = vmatprep.subr.bf16.mxu0 0
  %535 = vmatpush1.bf16.msra.mxu0 0
  %536 = vmatprep.subr.bf16.mxu0 0
  %537 = vmatpush1.bf16.msra.mxu0 0
  %538 = vmatprep.subr.bf16.mxu0 0
  %539 = vmatpush1.bf16.msra.mxu0 0
  %540 = vmatprep.subr.bf16.mxu0 0
  %541 = vmatpush1.bf16.msra.mxu0 0
  %542 = vmatprep.subr.bf16.mxu0 0
  %543 = vmatpush1.bf16.msra.mxu0 0
  %544 = vmatprep.subr.bf16.mxu0 0
  %545 = vmatpush1.bf16.msra.mxu0 0
  %546 = vmatprep.subr.bf16.mxu0 0
  %547 = vmatpush1.bf16.msra.mxu0 0
  %548 = vmatprep.subr.bf16.mxu0 0
  %549 = vmatpush1.bf16.msra.mxu0 0
  %550 = vmatprep.subr.bf16.mxu0 0
  %551 = vmatpush1.bf16.msra.mxu0 0
  %552 = vmatprep.mubr.bf16.mxu0 0
  %553 = vmatmul.mubr.bf16.gmra.mrb[0].mxu0 %v518
  %v554 = vpop.f32.mrb[0].mxu0
  %v555 = vadd.f32 0.0, %v554
  %v556 = vpop.f32.mrb[0].mxu0
  %v557 = vpop.f32.mrb[0].mxu0
  %v558 = vpop.f32.mrb[0].mxu0
  %559 = vdwg.mxu0
  %v560 = vadd.f32 %v139, %v555
  %v561 = vmul.f32 %v560, 0.5
  %v562 = vtanh.pop %v561
  %v563 = vmul.f32 %v562, 0.5
  %v564 = vadd.f32 %v563, 0.5
  %v565 = vtanh.pop %v560
  %v566 = vmul.f32 %v564, %v506
  %568 = vrot.lane.b32.xlu0 %v565, 64
  %v569 = vpop.permute.xlu0 %568
  %v571 = vmul.f32 %v564, %v569
  %573 = vrot.lane.b32.xlu0 %v571, 32
  %v574 = vpop.permute.xlu0 %573
  %v576 = vadd.f32 %v566, %v574
  %v577 = vtanh.pop %v576
  %579 = vrot.lane.b32.xlu0 %v577, 64
  %v580 = vpop.permute.xlu0 %579
  %v582 = vmul.f32 %v564, %v580
  %v583 = vpack.c.bf16 %v582, %v582
  %585 = vrot.lane.b32.xlu0 %v583, 32
  %v586 = vpop.permute.xlu0 %585
  %v588 = vsel %vm166, %v586, 0
  %590 = vmatprep.subr.bf16.mxu0 0
  %591 = vmatpush1.bf16.msra.mxu0 %v162
  %592 = vmatprep.subr.bf16.mxu0 0
  %593 = vmatpush1.bf16.msra.mxu0 %v163
  %594 = vmatprep.subr.bf16.mxu0 0
  %595 = vmatpush1.bf16.msra.mxu0 0
  %596 = vmatprep.subr.bf16.mxu0 0
  %597 = vmatpush1.bf16.msra.mxu0 0
  %598 = vmatprep.subr.bf16.mxu0 0
  %599 = vmatpush1.bf16.msra.mxu0 0
  %600 = vmatprep.subr.bf16.mxu0 0
  %601 = vmatpush1.bf16.msra.mxu0 0
  %602 = vmatprep.subr.bf16.mxu0 0
  %603 = vmatpush1.bf16.msra.mxu0 0
  %604 = vmatprep.subr.bf16.mxu0 0
  %605 = vmatpush1.bf16.msra.mxu0 0
  %606 = vmatprep.subr.bf16.mxu0 0
  %607 = vmatpush1.bf16.msra.mxu0 0
  %608 = vmatprep.subr.bf16.mxu0 0
  %609 = vmatpush1.bf16.msra.mxu0 0
  %610 = vmatprep.subr.bf16.mxu0 0
  %611 = vmatpush1.bf16.msra.mxu0 0
  %612 = vmatprep.subr.bf16.mxu0 0
  %613 = vmatpush1.bf16.msra.mxu0 0
  %614 = vmatprep.subr.bf16.mxu0 0
  %615 = vmatpush1.bf16.msra.mxu0 0
  %616 = vmatprep.subr.bf16.mxu0 0
  %617 = vmatpush1.bf16.msra.mxu0 0
  %618 = vmatprep.subr.bf16.mxu0 0
  %619 = vmatpush1.bf16.msra.mxu0 0
  %620 = vmatprep.subr.bf16.mxu0 0
  %621 = vmatpush1.bf16.msra.mxu0 0
  %622 = vmatprep.mubr.bf16.mxu0 0
  %623 = vmatmul.mubr.bf16.gmra.mrb[0].mxu0 %v588
  %v624 = vpop.f32.mrb[0].mxu0
  %v625 = vadd.f32 0.0, %v624
  %v626 = vpop.f32.mrb[0].mxu0
  %v627 = vpop.f32.mrb[0].mxu0
  %v628 = vpop.f32.mrb[0].mxu0
  %629 = vdwg.mxu0
  %v630 = vadd.f32 %v144, %v625
  %v631 = vmul.f32 %v630, 0.5
  %v632 = vtanh.pop %v631
  %v633 = vmul.f32 %v632, 0.5
  %v634 = vadd.f32 %v633, 0.5
  %v635 = vtanh.pop %v630
  %v636 = vmul.f32 %v634, %v576
  %638 = vrot.lane.b32.xlu0 %v635, 64
  %v639 = vpop.permute.xlu0 %638
  %v641 = vmul.f32 %v634, %v639
  %643 = vrot.lane.b32.xlu0 %v641, 32
  %v644 = vpop.permute.xlu0 %643
  %v646 = vadd.f32 %v636, %v644
  %v647 = vtanh.pop %v646
  %649 = vrot.lane.b32.xlu0 %v647, 64
  %v650 = vpop.permute.xlu0 %649
  %v652 = vmul.f32 %v634, %v650
  %v653 = vpack.c.bf16 %v652, %v652
  %655 = vrot.lane.b32.xlu0 %v653, 32
  %v656 = vpop.permute.xlu0 %655
  %v658 = vsel %vm166, %v656, 0
  %660 = vmatprep.subr.bf16.mxu0 0
  %661 = vmatpush1.bf16.msra.mxu0 %v162
  %662 = vmatprep.subr.bf16.mxu0 0
  %663 = vmatpush1.bf16.msra.mxu0 %v163
  %664 = vmatprep.subr.bf16.mxu0 0
  %665 = vmatpush1.bf16.msra.mxu0 0
  %666 = vmatprep.subr.bf16.mxu0 0
  %667 = vmatpush1.bf16.msra.mxu0 0
  %668 = vmatprep.subr.bf16.mxu0 0
  %669 = vmatpush1.bf16.msra.mxu0 0
  %670 = vmatprep.subr.bf16.mxu0 0
  %671 = vmatpush1.bf16.msra.mxu0 0
  %672 = vmatprep.subr.bf16.mxu0 0
  %673 = vmatpush1.bf16.msra.mxu0 0
  %674 = vmatprep.subr.bf16.mxu0 0
  %675 = vmatpush1.bf16.msra.mxu0 0
  %676 = vmatprep.subr.bf16.mxu0 0
  %677 = vmatpush1.bf16.msra.mxu0 0
  %678 = vmatprep.subr.bf16.mxu0 0
  %679 = vmatpush1.bf16.msra.mxu0 0
  %680 = vmatprep.subr.bf16.mxu0 0
  %681 = vmatpush1.bf16.msra.mxu0 0
  %682 = vmatprep.subr.bf16.mxu0 0
  %683 = vmatpush1.bf16.msra.mxu0 0
  %684 = vmatprep.subr.bf16.mxu0 0
  %685 = vmatpush1.bf16.msra.mxu0 0
  %686 = vmatprep.subr.bf16.mxu0 0
  %687 = vmatpush1.bf16.msra.mxu0 0
  %688 = vmatprep.subr.bf16.mxu0 0
  %689 = vmatpush1.bf16.msra.mxu0 0
  %690 = vmatprep.subr.bf16.mxu0 0
  %691 = vmatpush1.bf16.msra.mxu0 0
  %692 = vmatprep.mubr.bf16.mxu0 0
  %693 = vmatmul.mubr.bf16.gmra.mrb[0].mxu0 %v658
  %v694 = vpop.f32.mrb[0].mxu0
  %v695 = vadd.f32 0.0, %v694
  %v696 = vpop.f32.mrb[0].mxu0
  %v697 = vpop.f32.mrb[0].mxu0
  %v698 = vpop.f32.mrb[0].mxu0
  %699 = vdwg.mxu0
  %v700 = vadd.f32 %v147, %v695
  %v701 = vmul.f32 %v700, 0.5
  %v702 = vtanh.pop %v701
  %v703 = vmul.f32 %v702, 0.5
  %v704 = vadd.f32 %v703, 0.5
  %v705 = vtanh.pop %v700
  %v706 = vmul.f32 %v704, %v646
  %708 = vrot.lane.b32.xlu0 %v705, 64
  %v709 = vpop.permute.xlu0 %708
  %v711 = vmul.f32 %v704, %v709
  %713 = vrot.lane.b32.xlu0 %v711, 32
  %v714 = vpop.permute.xlu0 %713
  %v716 = vadd.f32 %v706, %v714
  %v717 = vtanh.pop %v716
  %719 = vrot.lane.b32.xlu0 %v717, 64
  %v720 = vpop.permute.xlu0 %719
  %v722 = vmul.f32 %v704, %v720
  %v723 = vpack.c.bf16 %v722, %v722
  %v724 = vld [vmem:[%s4] sm:$0xf]
  %v725 = vld [vmem:[%s4 + $0x4] sm:$0xf]
  %v726 = vld [vmem:[%s4 + $0x8] sm:$0xf]
  %v727 = vld [vmem:[%s4 + $0xc] sm:$0xf]
  %v728 = vld [vmem:[%s5] sm:$0x1]
  %v730 = vlaneseq
  %v731 = vshrl.u32 %v730, 7
  %v732 = vsub.s32 0, %v731
  %v733 = vrot.slane %v728, %v732
  %736 = vrot.lane.b32.xlu0 %v723, 32
  %v737 = vpop.permute.xlu0 %736
  %v742 = vunpack.c.l.b16 %v724
  %v743 = vunpack.c.l.b16 %v725
  %v744 = vunpack.c.l.b16 %v726
  %v745 = vunpack.c.l.b16 %v727
  %v746 = vpack.c.b16 %v743, %v742
  %v747 = vpack.c.b16 %v745, %v744
  %v751 = vsel %vm166, %v737, 0
  %753 = vmatprep.subr.bf16.mxu0 0
  %754 = vmatpush1.bf16.msra.mxu0 %v746
  %755 = vmatprep.subr.bf16.mxu0 0
  %756 = vmatpush1.bf16.msra.mxu0 %v747
  %757 = vmatprep.subr.bf16.mxu0 0
  %758 = vmatpush1.bf16.msra.mxu0 0
  %759 = vmatprep.subr.bf16.mxu0 0
  %760 = vmatpush1.bf16.msra.mxu0 0
  %761 = vmatprep.subr.bf16.mxu0 0
  %762 = vmatpush1.bf16.msra.mxu0 0
  %763 = vmatprep.subr.bf16.mxu0 0
  %764 = vmatpush1.bf16.msra.mxu0 0
  %765 = vmatprep.subr.bf16.mxu0 0
  %766 = vmatpush1.bf16.msra.mxu0 0
  %767 = vmatprep.subr.bf16.mxu0 0
  %768 = vmatpush1.bf16.msra.mxu0 0
  %769 = vmatprep.subr.bf16.mxu0 0
  %770 = vmatpush1.bf16.msra.mxu0 0
  %771 = vmatprep.subr.bf16.mxu0 0
  %772 = vmatpush1.bf16.msra.mxu0 0
  %773 = vmatprep.subr.bf16.mxu0 0
  %774 = vmatpush1.bf16.msra.mxu0 0
  %775 = vmatprep.subr.bf16.mxu0 0
  %776 = vmatpush1.bf16.msra.mxu0 0
  %777 = vmatprep.subr.bf16.mxu0 0
  %778 = vmatpush1.bf16.msra.mxu0 0
  %779 = vmatprep.subr.bf16.mxu0 0
  %780 = vmatpush1.bf16.msra.mxu0 0
  %781 = vmatprep.subr.bf16.mxu0 0
  %782 = vmatpush1.bf16.msra.mxu0 0
  %783 = vmatprep.subr.bf16.mxu0 0
  %784 = vmatpush1.bf16.msra.mxu0 0
  %785 = vmatprep.mubr.bf16.mxu0 0
  %786 = vmatmul.mubr.bf16.gmra.mrb[0].mxu0 %v751
  %v787 = vpop.f32.mrb[0].mxu0
  %v788 = vadd.f32 %v733, %v787
  %v789 = vpop.f32.mrb[0].mxu0
  %v790 = vpop.f32.mrb[0].mxu0
  %v791 = vpop.f32.mrb[0].mxu0
  %792 = vdwg.mxu0
  %v793 = vmax.f32 %v788, 0.0
  %v794 = vpack.c.bf16 %v793, %v793
  %v795 = vld [vmem:[%s6] sm:$0xf]
  %v796 = vld [vmem:[%s6 + $0x4] sm:$0xf]
  %v797 = vld [vmem:[%s6 + $0x8] sm:$0xf]
  %v798 = vld [vmem:[%s6 + $0xc] sm:$0xf]
  %v799 = vld [vmem:[#allocation2] sm:$0x1]
  %v801 = vlaneseq
  %v802 = vshrl.u32 %v801, 7
  %v803 = vsub.s32 0, %v802
  %v804 = vrot.slane %v799, %v803
  %v810 = vunpack.c.l.b16 %v795
  %v811 = vunpack.c.l.b16 %v796
  %v812 = vunpack.c.l.b16 %v797
  %v813 = vunpack.c.l.b16 %v798
  %v814 = vpack.c.b16 %v811, %v810
  %v815 = vpack.c.b16 %v813, %v812
  %v819 = vsel %vm166, %v794, 0
  %821 = vmatprep.subr.bf16.mxu0 0
  %822 = vmatpush1.bf16.msra.mxu0 %v814
  %823 = vmatprep.subr.bf16.mxu0 0
  %824 = vmatpush1.bf16.msra.mxu0 %v815
  %825 = vmatprep.subr.bf16.mxu0 0
  %826 = vmatpush1.bf16.msra.mxu0 0
  %827 = vmatprep.subr.bf16.mxu0 0
  %828 = vmatpush1.bf16.msra.mxu0 0
  %829 = vmatprep.subr.bf16.mxu0 0
  %830 = vmatpush1.bf16.msra.mxu0 0
  %831 = vmatprep.subr.bf16.mxu0 0
  %832 = vmatpush1.bf16.msra.mxu0 0
  %833 = vmatprep.subr.bf16.mxu0 0
  %834 = vmatpush1.bf16.msra.mxu0 0
  %835 = vmatprep.subr.bf16.mxu0 0
  %836 = vmatpush1.bf16.msra.mxu0 0
  %837 = vmatprep.subr.bf16.mxu0 0
  %838 = vmatpush1.bf16.msra.mxu0 0
  %839 = vmatprep.subr.bf16.mxu0 0
  %840 = vmatpush1.bf16.msra.mxu0 0
  %841 = vmatprep.subr.bf16.mxu0 0
  %842 = vmatpush1.bf16.msra.mxu0 0
  %843 = vmatprep.subr.bf16.mxu0 0
  %844 = vmatpush1.bf16.msra.mxu0 0
  %845 = vmatprep.subr.bf16.mxu0 0
  %846 = vmatpush1.bf16.msra.mxu0 0
  %847 = vmatprep.subr.bf16.mxu0 0
  %848 = vmatpush1.bf16.msra.mxu0 0
  %849 = vmatprep.subr.bf16.mxu0 0
  %850 = vmatpush1.bf16.msra.mxu0 0
  %851 = vmatprep.subr.bf16.mxu0 0
  %852 = vmatpush1.bf16.msra.mxu0 0
  %853 = vmatprep.mubr.bf16.mxu0 0
  %854 = vmatmul.mubr.bf16.gmra.mrb[0].mxu0 %v819
  %v855 = vpop.f32.mrb[0].mxu0
  %v856 = vadd.f32 %v804, %v855
  %v857 = vpop.f32.mrb[0].mxu0
  %v858 = vpop.f32.mrb[0].mxu0
  %v859 = vpop.f32.mrb[0].mxu0
  %860 = vdwg.mxu0
  %vm861 = vcmask 7168
  %862 = vst.msk [vmem:[%s8] sm:$0xff] %vm861, %v856
  // Predicated region
  $region34: #{bayesian_lstm_forward.1} parent=0 // pred_check
    _
  $region35: #{bayesian_lstm_forward.1} parent=0 // pred_check_branch
    %864 = sbr.rel (0) target = $region37
  $region36: #{bayesian_lstm_forward.1} parent=0 // pred_region
    _
  $region37: #{bayesian_lstm_forward.1} parent=0 // pred_fallthru
    _
  // Predicated region
  $region38: #{bayesian_lstm_forward.1} parent=0 // pred_check
    _
  $region39: #{bayesian_lstm_forward.1} parent=0 // pred_check_branch
    %866 = sbr.rel (0) target = $region41
  $region40: #{bayesian_lstm_forward.1} parent=0 // pred_region
    _
  $region41: #{bayesian_lstm_forward.1} parent=0 // pred_fallthru
    _

</llo_original>
